<compile_context>
chip_gen: v6e
topology: v6e:2x2x1
jax: 0.10.0
libtpu: 0.0.40
codegen_flags: <defaults>
</compile_context>

<pallas_src>
import functools

import jax
import jax.numpy as jnp
from jax.experimental import pallas as pl
from jax.experimental.pallas import tpu as pltpu


def _round_up(v, m):
    return (v + m - 1) // m * m


def _sage_kernel(a_ref, p_ref, x_ref, w1_ref, w2_ref, w3_ref, vec_ref,
                 out_ref, *, out_dim):
    f32 = jnp.float32
    bf16 = jnp.bfloat16

    A = a_ref[...]                      # [Np, Np] bf16, 0/1 edge counts
    x0 = x_ref[...]                     # [Np, Fp] bf16
    Fp = x_ref.shape[-1]
    Hp = w1_ref.shape[-1]               # padded hidden width
    Op = out_ref.shape[-1]              # padded output width

    b1 = vec_ref[0:1, :Hp]
    b2 = vec_ref[1:2, :Hp]
    b3 = vec_ref[2:3, :Op]
    gamma = vec_ref[3:4, :Op]
    beta = vec_ref[4:5, :Op]

    # In-degree from adjacency row sums; 1/deg applied post-MXU in f32.
    deg = jnp.sum(A.astype(f32), axis=1, keepdims=True)        # [Np, 1]
    dinv = jnp.where(deg > 0.0, 1.0 / jnp.maximum(deg, 1.0), 0.0)

    # ---- SAGEConv 1: mean-aggregate, two dots on weight-ref slices, ReLU ---
    h = dinv * jnp.dot(A, x0, preferred_element_type=f32)
    x1 = jnp.maximum(
        jnp.dot(h.astype(bf16), w1_ref[:Fp, :], preferred_element_type=f32)
        + jnp.dot(x0, w1_ref[Fp:, :], preferred_element_type=f32)
        + b1, 0.0)
    x1b = x1.astype(bf16)

    # ---- SAGEConv 2 --------------------------------------------------------
    h = dinv * jnp.dot(A, x1b, preferred_element_type=f32)
    x2 = jnp.maximum(
        jnp.dot(h.astype(bf16), w2_ref[:Hp, :], preferred_element_type=f32)
        + jnp.dot(x1b, w2_ref[Hp:, :], preferred_element_type=f32)
        + b2, 0.0)
    x2b = x2.astype(bf16)

    # ---- SAGEConv 3: project-then-aggregate (output_dim < hidden_dim) ------
    # W3 = [W3l | W3r] fused along the output axis -> one projection matmul.
    proj = jnp.dot(x2b, w3_ref[...], preferred_element_type=f32)   # [Np, 2Op]
    z = (dinv * jnp.dot(A, proj[:, :Op].astype(bf16), preferred_element_type=f32)
         + proj[:, Op:] + b3)

    # ---- global_mean_pool (counts from P row sums, 1/count post-MXU) -------
    P = p_ref[...]                                                 # [Gp, Np] bf16
    cnt = jnp.sum(P.astype(f32), axis=1, keepdims=True)
    cinv = jnp.where(cnt > 0.0, 1.0 / jnp.maximum(cnt, 1.0), 0.0)
    pooled = cinv * jnp.dot(P, z.astype(bf16), preferred_element_type=f32)

    # ---- LayerNorm over the REAL out_dim (two-pass variance), eps=1e-5 -----
    col = jax.lax.broadcasted_iota(jnp.int32, (1, Op), 1)
    mask = col < out_dim
    inv_d = f32(1.0 / out_dim)
    mu = jnp.sum(pooled, axis=-1, keepdims=True) * inv_d          # padded cols are 0
    cent = jnp.where(mask, pooled - mu, 0.0)
    var = jnp.sum(cent * cent, axis=-1, keepdims=True) * inv_d
    normed = cent * jax.lax.rsqrt(var + 1e-5)
    # padded output columns have gamma = beta = 0 -> stay exactly zero.
    out_ref[...] = normed * gamma + beta


def pattern_graphsage_forward(x, edge_index, batch, params, num_graphs):
    """Forward pass of PatternGraphSAGE (PyG branch, eval mode).

    x          : [N, F_in] float32 node features
    edge_index : [2, E] int32, row 0 = source nodes, row 1 = target nodes
    batch      : [N] int32 graph id per node
    params     : dict of weights (see init_params; Linear weights are [in, out])
    """
    f32, bf16 = jnp.float32, jnp.bfloat16
    N, F_in = x.shape
    H = params["w1l"].shape[1]
    OUT = params["w3l"].shape[1]

    Np = _round_up(N, 16)               # bf16: 2 sublanes per vreg row
    Gp = _round_up(num_graphs, 16)
    Fp = _round_up(F_in, 128)
    Hp = _round_up(H, 128)
    Op = _round_up(OUT, 128)
    Vp = max(Hp, Op)

    src, dst = edge_index[0], edge_index[1]

    # 0/1 (count) adjacency built directly in bf16; exact for multiplicities
    # up to 256 per (dst, src) pair.  The 1/deg scale is derived in-kernel.
    A = jnp.zeros((Np, Np), bf16).at[dst, src].add(jnp.ones(src.shape, bf16))

    # Graph-membership one-hot, built directly in bf16; 1/|graph| in-kernel.
    gid = jnp.arange(Gp, dtype=batch.dtype)
    P = (batch[None, :] == gid[:, None]).astype(bf16)              # [Gp, N]
    P = jnp.pad(P, ((0, 0), (0, Np - N)))

    xp = jnp.pad(x, ((0, Np - N), (0, Fp - F_in))).astype(bf16)

    def pad2(w, r, c):
        return jnp.pad(w, ((0, r - w.shape[0]), (0, c - w.shape[1])))

    # Packed weights: layers 1/2 stacked along the contraction (K) axis (the
    # kernel slices the ref statically and issues two dots), layer 3 fused
    # along the output (N) axis (one projection matmul).
    w1 = jnp.concatenate([pad2(params["w1l"], Fp, Hp),
                          pad2(params["w1r"], Fp, Hp)], axis=0).astype(bf16)  # [2Fp, Hp]
    w2 = jnp.concatenate([pad2(params["w2l"], Hp, Hp),
                          pad2(params["w2r"], Hp, Hp)], axis=0).astype(bf16)  # [2Hp, Hp]
    w3 = jnp.concatenate([pad2(params["w3l"], Hp, Op),
                          pad2(params["w3r"], Hp, Op)], axis=1).astype(bf16)  # [Hp, 2Op]

    # Pack all small per-feature vectors into one lane-dense [8, Vp] input.
    vecs = jnp.zeros((8, Vp), f32)
    vecs = vecs.at[0, :H].set(params["b1"].reshape(-1))
    vecs = vecs.at[1, :H].set(params["b2"].reshape(-1))
    vecs = vecs.at[2, :OUT].set(params["b3"].reshape(-1))
    vecs = vecs.at[3, :OUT].set(params["gamma"].reshape(-1))
    vecs = vecs.at[4, :OUT].set(params["beta"].reshape(-1))

    inputs = (A, P, xp, w1, w2, w3, vecs)

    bytes_in = sum(int(a.size) * a.dtype.itemsize for a in inputs)
    bytes_out = Gp * Op * 4
    # Explicit working-set estimate (no grid -> no double-buffering):
    # f32 temporaries h / x1 / x2 / proj / z plus bf16 activation casts.
    bytes_tmp = (4 * Np * (Fp + 2 * Hp + 3 * Op)       # h, x1, x2, proj, z (f32)
                 + 2 * Np * (2 * Hp + Op)              # x1b, x2b, bf16 casts
                 + 4 * (Np + 2 * Gp)                   # deg/cnt scales
                 + 4 * Gp * Op)                        # pooled
    vmem_limit = int(min(48 << 20,
                         max(4 << 20, bytes_in + bytes_out + bytes_tmp + (2 << 20))))

    flops = 2 * (Np * Np * Fp + Np * (2 * Fp) * Hp          # layer 1
                 + Np * Np * Hp + Np * (2 * Hp) * Hp        # layer 2
                 + Np * Hp * (2 * Op) + Np * Np * Op        # layer 3
                 + Gp * Np * Op)                            # pooling

    vmem = functools.partial(pl.BlockSpec, memory_space=pltpu.MemorySpace.VMEM)

    kernel = pl.pallas_call(
        functools.partial(_sage_kernel, out_dim=OUT),
        out_shape=jax.ShapeDtypeStruct((Gp, Op), f32),
        in_specs=[vmem()] * len(inputs),
        out_specs=vmem(),
        compiler_params=pltpu.CompilerParams(vmem_limit_bytes=vmem_limit),
        cost_estimate=pl.CostEstimate(flops=flops, transcendentals=Gp,
                                      bytes_accessed=bytes_in + bytes_out),
    )
    out = kernel(*inputs)
    return out[:num_graphs, :OUT]


def _reference_forward(x, edge_index, batch, params, num_graphs):
    """Pure-JAX f32 reference (mirrors PyG eval semantics) for validation."""
    N = x.shape[0]
    src, dst = edge_index[0], edge_index[1]
    adj = jnp.zeros((N, N), jnp.float32).at[dst, src].add(1.0)
    deg = adj.sum(axis=1, keepdims=True)
    A = jnp.where(deg > 0, adj / jnp.maximum(deg, 1.0), 0.0)

    def sage(xv, wl, wr, b):
        return (A @ xv) @ wl + xv @ wr + b

    h1 = jax.nn.relu(sage(x, params["w1l"], params["w1r"], params["b1"]))
    h2 = jax.nn.relu(sage(h1, params["w2l"], params["w2r"], params["b2"]))
    h3 = sage(h2, params["w3l"], params["w3r"], params["b3"])

    onehot = (batch[None, :] == jnp.arange(num_graphs)[:, None]).astype(jnp.float32)
    pooled = (onehot @ h3) / jnp.maximum(onehot.sum(1, keepdims=True), 1.0)

    mu = pooled.mean(-1, keepdims=True)
    var = ((pooled - mu) ** 2).mean(-1, keepdims=True)
    return (pooled - mu) * jax.lax.rsqrt(var + 1e-5) * params["gamma"] + params["beta"]


def init_params(key, input_dim, hidden_dim, output_dim):
    """Deterministic synthetic weights.  Linear weights stored as [in, out]
    (already transposed relative to PyTorch's [out, in]); biases as [1, out]."""
    ks = jax.random.split(key, 8)

    def lin(k, fan_in, fan_out):
        scale = 1.0 / jnp.sqrt(jnp.float32(fan_in))
        return jax.random.uniform(k, (fan_in, fan_out), jnp.float32, -scale, scale)

    def bias(k, fan_in, fan_out):
        scale = 1.0 / jnp.sqrt(jnp.float32(fan_in))
        return jax.random.uniform(k, (1, fan_out), jnp.float32, -scale, scale)

    return {
        "w1l": lin(ks[0], input_dim, hidden_dim),
        "w1r": lin(ks[1], input_dim, hidden_dim),
        "b1": bias(ks[6], input_dim, hidden_dim),
        "w2l": lin(ks[2], hidden_dim, hidden_dim),
        "w2r": lin(ks[3], hidden_dim, hidden_dim),
        "b2": bias(ks[7], hidden_dim, hidden_dim),
        "w3l": lin(ks[4], hidden_dim, output_dim),
        "w3r": lin(ks[5], hidden_dim, output_dim),
        "b3": jnp.zeros((1, output_dim), jnp.float32),
        "gamma": jnp.ones((1, output_dim), jnp.float32),
        "beta": jnp.zeros((1, output_dim), jnp.float32),
    }


if __name__ == "__main__":
    # Small shapes consistent with the module (num_layers=3 SAGE stack).
    INPUT_DIM, HIDDEN_DIM, OUTPUT_DIM = 8, 32, 16
    N_NODES, N_EDGES, N_GRAPHS = 16, 40, 2

    key = jax.random.PRNGKey(0)
    k_x, k_e1, k_e2, k_w = jax.random.split(key, 4)

    x = jax.random.normal(k_x, (N_NODES, INPUT_DIM), jnp.float32)
    src = jax.random.randint(k_e1, (N_EDGES,), 0, N_NODES, jnp.int32)
    dst = jax.random.randint(k_e2, (N_EDGES,), 0, N_NODES, jnp.int32)
    edge_index = jnp.stack([src, dst], axis=0)
    batch = jnp.concatenate([jnp.zeros(N_NODES // 2, jnp.int32),
                             jnp.ones(N_NODES - N_NODES // 2, jnp.int32)])

    params = init_params(k_w, INPUT_DIM, HIDDEN_DIM, OUTPUT_DIM)

    out = pattern_graphsage_forward(x, edge_index, batch, params, N_GRAPHS)
    out = jax.block_until_ready(out)
    ref = jax.block_until_ready(
        _reference_forward(x, edge_index, batch, params, N_GRAPHS))

    assert out.shape == (N_GRAPHS, OUTPUT_DIM)
    assert bool(jnp.all(jnp.isfinite(out)))
    # bf16 MXU operands -> generous absolute tolerance vs. the f32 reference.
    assert float(jnp.max(jnp.abs(out - ref))) < 0.2
    print("KERNEL_OK")
</pallas_src>

<mosaic_0001>
module attributes {stable_mosaic.version = 11 : i64} {
  func.func @_sage_kernel(%arg0: memref<16x16xbf16, #tpu.memory_space<vmem>>, %arg1: memref<16x16xbf16, #tpu.memory_space<vmem>>, %arg2: memref<16x128xbf16, #tpu.memory_space<vmem>>, %arg3: memref<256x128xbf16, #tpu.memory_space<vmem>>, %arg4: memref<256x128xbf16, #tpu.memory_space<vmem>>, %arg5: memref<128x256xbf16, #tpu.memory_space<vmem>>, %arg6: memref<8x128xf32, #tpu.memory_space<vmem>>, %arg7: memref<16x128xf32, #tpu.memory_space<vmem>>) attributes {dimension_semantics = [], scalar_prefetch = 0 : i64, scratch_operands = 0 : i64, tpu.core_type = #tpu.core_type<tc>} {
    %c0 = arith.constant 0 : index
    %c0_0 = arith.constant 0 : index
    %0 = vector.load %arg0[%c0, %c0_0] : memref<16x16xbf16, #tpu.memory_space<vmem>>, vector<16x16xbf16>
    %c0_1 = arith.constant 0 : index
    %c0_2 = arith.constant 0 : index
    %1 = vector.load %arg2[%c0_1, %c0_2] : memref<16x128xbf16, #tpu.memory_space<vmem>>, vector<16x128xbf16>
    %c0_3 = arith.constant 0 : index
    %c0_4 = arith.constant 0 : index
    %2 = vector.load %arg6[%c0_3, %c0_4] : memref<8x128xf32, #tpu.memory_space<vmem>>, vector<1x128xf32>
    %c1 = arith.constant 1 : index
    %c0_5 = arith.constant 0 : index
    %3 = vector.load %arg6[%c1, %c0_5] : memref<8x128xf32, #tpu.memory_space<vmem>>, vector<1x128xf32>
    %c2 = arith.constant 2 : index
    %c0_6 = arith.constant 0 : index
    %4 = vector.load %arg6[%c2, %c0_6] : memref<8x128xf32, #tpu.memory_space<vmem>>, vector<1x128xf32>
    %c3 = arith.constant 3 : index
    %c0_7 = arith.constant 0 : index
    %5 = vector.load %arg6[%c3, %c0_7] : memref<8x128xf32, #tpu.memory_space<vmem>>, vector<1x128xf32>
    %c4 = arith.constant 4 : index
    %c0_8 = arith.constant 0 : index
    %6 = vector.load %arg6[%c4, %c0_8] : memref<8x128xf32, #tpu.memory_space<vmem>>, vector<1x128xf32>
    %7 = arith.extf %0 : vector<16x16xbf16> to vector<16x16xf32>
    %cst = arith.constant dense<0.000000e+00> : vector<16xf32>
    %8 = vector.multi_reduction <add>, %7, %cst [1] : vector<16x16xf32> to vector<16xf32>
    %9 = vector.shape_cast %8 : vector<16xf32> to vector<16x1xf32>
    %cst_9 = arith.constant 0.000000e+00 : f32
    %10 = vector.broadcast %cst_9 : f32 to vector<16x1xf32>
    %11 = arith.cmpf ogt, %9, %10 : vector<16x1xf32>
    %cst_10 = arith.constant 1.000000e+00 : f32
    %12 = vector.broadcast %cst_10 : f32 to vector<16x1xf32>
    %13 = arith.maximumf %9, %12 : vector<16x1xf32>
    %cst_11 = arith.constant 1.000000e+00 : f32
    %14 = vector.broadcast %cst_11 : f32 to vector<16x1xf32>
    %15 = arith.divf %14, %13 : vector<16x1xf32>
    %cst_12 = arith.constant 0.000000e+00 : f32
    %16 = vector.broadcast %cst_12 : f32 to vector<16x1xf32>
    %17 = arith.select %11, %15, %16 : vector<16x1xi1>, vector<16x1xf32>
    %cst_13 = arith.constant dense<0.000000e+00> : vector<16x128xf32>
    %18 = tpu.matmul %0, %1, %cst_13 {dimension_numbers = #tpu.dot_dimension_numbers<[1], [0], [0], [1], [0, 0, 1, 1], [], []>} : vector<16x16xbf16>, vector<16x128xbf16>, vector<16x128xf32> -> vector<16x128xf32>
    %19 = vector.broadcast %17 : vector<16x1xf32> to vector<16x128xf32>
    %20 = arith.mulf %19, %18 : vector<16x128xf32>
    %21 = arith.truncf %20 : vector<16x128xf32> to vector<16x128xbf16>
    %c0_14 = arith.constant 0 : index
    %c0_15 = arith.constant 0 : index
    %22 = vector.load %arg3[%c0_14, %c0_15] : memref<256x128xbf16, #tpu.memory_space<vmem>>, vector<128x128xbf16>
    %cst_16 = arith.constant dense<0.000000e+00> : vector<16x128xf32>
    %23 = tpu.matmul %21, %22, %cst_16 {dimension_numbers = #tpu.dot_dimension_numbers<[1], [0], [0], [1], [0, 0, 1, 1], [], []>} : vector<16x128xbf16>, vector<128x128xbf16>, vector<16x128xf32> -> vector<16x128xf32>
    %c128 = arith.constant 128 : index
    %c0_17 = arith.constant 0 : index
    %24 = vector.load %arg3[%c128, %c0_17] : memref<256x128xbf16, #tpu.memory_space<vmem>>, vector<128x128xbf16>
    %cst_18 = arith.constant dense<0.000000e+00> : vector<16x128xf32>
    %25 = tpu.matmul %1, %24, %cst_18 {dimension_numbers = #tpu.dot_dimension_numbers<[1], [0], [0], [1], [0, 0, 1, 1], [], []>} : vector<16x128xbf16>, vector<128x128xbf16>, vector<16x128xf32> -> vector<16x128xf32>
    %26 = arith.addf %23, %25 : vector<16x128xf32>
    %27 = vector.broadcast %2 : vector<1x128xf32> to vector<16x128xf32>
    %28 = arith.addf %26, %27 : vector<16x128xf32>
    %cst_19 = arith.constant 0.000000e+00 : f32
    %29 = vector.broadcast %cst_19 : f32 to vector<16x128xf32>
    %30 = arith.maximumf %28, %29 : vector<16x128xf32>
    %31 = arith.truncf %30 : vector<16x128xf32> to vector<16x128xbf16>
    %cst_20 = arith.constant dense<0.000000e+00> : vector<16x128xf32>
    %32 = tpu.matmul %0, %31, %cst_20 {dimension_numbers = #tpu.dot_dimension_numbers<[1], [0], [0], [1], [0, 0, 1, 1], [], []>} : vector<16x16xbf16>, vector<16x128xbf16>, vector<16x128xf32> -> vector<16x128xf32>
    %33 = vector.broadcast %17 : vector<16x1xf32> to vector<16x128xf32>
    %34 = arith.mulf %33, %32 : vector<16x128xf32>
    %35 = arith.truncf %34 : vector<16x128xf32> to vector<16x128xbf16>
    %c0_21 = arith.constant 0 : index
    %c0_22 = arith.constant 0 : index
    %36 = vector.load %arg4[%c0_21, %c0_22] : memref<256x128xbf16, #tpu.memory_space<vmem>>, vector<128x128xbf16>
    %cst_23 = arith.constant dense<0.000000e+00> : vector<16x128xf32>
    %37 = tpu.matmul %35, %36, %cst_23 {dimension_numbers = #tpu.dot_dimension_numbers<[1], [0], [0], [1], [0, 0, 1, 1], [], []>} : vector<16x128xbf16>, vector<128x128xbf16>, vector<16x128xf32> -> vector<16x128xf32>
    %c128_24 = arith.constant 128 : index
    %c0_25 = arith.constant 0 : index
    %38 = vector.load %arg4[%c128_24, %c0_25] : memref<256x128xbf16, #tpu.memory_space<vmem>>, vector<128x128xbf16>
    %cst_26 = arith.constant dense<0.000000e+00> : vector<16x128xf32>
    %39 = tpu.matmul %31, %38, %cst_26 {dimension_numbers = #tpu.dot_dimension_numbers<[1], [0], [0], [1], [0, 0, 1, 1], [], []>} : vector<16x128xbf16>, vector<128x128xbf16>, vector<16x128xf32> -> vector<16x128xf32>
    %40 = arith.addf %37, %39 : vector<16x128xf32>
    %41 = vector.broadcast %3 : vector<1x128xf32> to vector<16x128xf32>
    %42 = arith.addf %40, %41 : vector<16x128xf32>
    %cst_27 = arith.constant 0.000000e+00 : f32
    %43 = vector.broadcast %cst_27 : f32 to vector<16x128xf32>
    %44 = arith.maximumf %42, %43 : vector<16x128xf32>
    %45 = arith.truncf %44 : vector<16x128xf32> to vector<16x128xbf16>
    %c0_28 = arith.constant 0 : index
    %c0_29 = arith.constant 0 : index
    %46 = vector.load %arg5[%c0_28, %c0_29] : memref<128x256xbf16, #tpu.memory_space<vmem>>, vector<128x256xbf16>
    %cst_30 = arith.constant dense<0.000000e+00> : vector<16x256xf32>
    %47 = tpu.matmul %45, %46, %cst_30 {dimension_numbers = #tpu.dot_dimension_numbers<[1], [0], [0], [1], [0, 0, 1, 1], [], []>} : vector<16x128xbf16>, vector<128x256xbf16>, vector<16x256xf32> -> vector<16x256xf32>
    %48 = vector.extract_strided_slice %47 {offsets = [0, 0], sizes = [16, 128], strides = [1, 1]} : vector<16x256xf32> to vector<16x128xf32>
    %49 = arith.truncf %48 : vector<16x128xf32> to vector<16x128xbf16>
    %cst_31 = arith.constant dense<0.000000e+00> : vector<16x128xf32>
    %50 = tpu.matmul %0, %49, %cst_31 {dimension_numbers = #tpu.dot_dimension_numbers<[1], [0], [0], [1], [0, 0, 1, 1], [], []>} : vector<16x16xbf16>, vector<16x128xbf16>, vector<16x128xf32> -> vector<16x128xf32>
    %51 = vector.broadcast %17 : vector<16x1xf32> to vector<16x128xf32>
    %52 = arith.mulf %51, %50 : vector<16x128xf32>
    %53 = vector.extract_strided_slice %47 {offsets = [0, 128], sizes = [16, 128], strides = [1, 1]} : vector<16x256xf32> to vector<16x128xf32>
    %54 = arith.addf %52, %53 : vector<16x128xf32>
    %55 = vector.broadcast %4 : vector<1x128xf32> to vector<16x128xf32>
    %56 = arith.addf %54, %55 : vector<16x128xf32>
    %c0_32 = arith.constant 0 : index
    %c0_33 = arith.constant 0 : index
    %57 = vector.load %arg1[%c0_32, %c0_33] : memref<16x16xbf16, #tpu.memory_space<vmem>>, vector<16x16xbf16>
    %58 = arith.extf %57 : vector<16x16xbf16> to vector<16x16xf32>
    %cst_34 = arith.constant dense<0.000000e+00> : vector<16xf32>
    %59 = vector.multi_reduction <add>, %58, %cst_34 [1] : vector<16x16xf32> to vector<16xf32>
    %60 = vector.shape_cast %59 : vector<16xf32> to vector<16x1xf32>
    %cst_35 = arith.constant 0.000000e+00 : f32
    %61 = vector.broadcast %cst_35 : f32 to vector<16x1xf32>
    %62 = arith.cmpf ogt, %60, %61 : vector<16x1xf32>
    %cst_36 = arith.constant 1.000000e+00 : f32
    %63 = vector.broadcast %cst_36 : f32 to vector<16x1xf32>
    %64 = arith.maximumf %60, %63 : vector<16x1xf32>
    %cst_37 = arith.constant 1.000000e+00 : f32
    %65 = vector.broadcast %cst_37 : f32 to vector<16x1xf32>
    %66 = arith.divf %65, %64 : vector<16x1xf32>
    %cst_38 = arith.constant 0.000000e+00 : f32
    %67 = vector.broadcast %cst_38 : f32 to vector<16x1xf32>
    %68 = arith.select %62, %66, %67 : vector<16x1xi1>, vector<16x1xf32>
    %69 = arith.truncf %56 : vector<16x128xf32> to vector<16x128xbf16>
    %cst_39 = arith.constant dense<0.000000e+00> : vector<16x128xf32>
    %70 = tpu.matmul %57, %69, %cst_39 {dimension_numbers = #tpu.dot_dimension_numbers<[1], [0], [0], [1], [0, 0, 1, 1], [], []>} : vector<16x16xbf16>, vector<16x128xbf16>, vector<16x128xf32> -> vector<16x128xf32>
    %71 = vector.broadcast %68 : vector<16x1xf32> to vector<16x128xf32>
    %72 = arith.mulf %71, %70 : vector<16x128xf32>
    %73 = tpu.iota {dimensions = array<i32: 1>} : vector<1x128xi32>
    %c16_i32 = arith.constant 16 : i32
    %74 = vector.broadcast %c16_i32 : i32 to vector<1x128xi32>
    %75 = arith.cmpi slt, %73, %74 : vector<1x128xi32>
    %cst_40 = arith.constant dense<0.000000e+00> : vector<16xf32>
    %76 = vector.multi_reduction <add>, %72, %cst_40 [1] : vector<16x128xf32> to vector<16xf32>
    %77 = vector.shape_cast %76 : vector<16xf32> to vector<16x1xf32>
    %cst_41 = arith.constant 6.250000e-02 : f32
    %78 = vector.broadcast %cst_41 : f32 to vector<16x1xf32>
    %79 = arith.mulf %77, %78 : vector<16x1xf32>
    %80 = vector.broadcast %79 : vector<16x1xf32> to vector<16x128xf32>
    %81 = arith.subf %72, %80 : vector<16x128xf32>
    %cst_42 = arith.constant 0.000000e+00 : f32
    %82 = vector.shape_cast %75 : vector<1x128xi1> to vector<1x128xi1>
    %83 = vector.broadcast %82 : vector<1x128xi1> to vector<16x128xi1>
    %84 = vector.broadcast %cst_42 : f32 to vector<16x128xf32>
    %85 = arith.select %83, %81, %84 : vector<16x128xi1>, vector<16x128xf32>
    %86 = arith.mulf %85, %85 : vector<16x128xf32>
    %cst_43 = arith.constant dense<0.000000e+00> : vector<16xf32>
    %87 = vector.multi_reduction <add>, %86, %cst_43 [1] : vector<16x128xf32> to vector<16xf32>
    %88 = vector.shape_cast %87 : vector<16xf32> to vector<16x1xf32>
    %cst_44 = arith.constant 6.250000e-02 : f32
    %89 = vector.broadcast %cst_44 : f32 to vector<16x1xf32>
    %90 = arith.mulf %88, %89 : vector<16x1xf32>
    %cst_45 = arith.constant 9.99999974E-6 : f32
    %91 = vector.broadcast %cst_45 : f32 to vector<16x1xf32>
    %92 = arith.addf %90, %91 : vector<16x1xf32>
    %93 = math.rsqrt %92 : vector<16x1xf32>
    %94 = vector.broadcast %93 : vector<16x1xf32> to vector<16x128xf32>
    %95 = arith.mulf %85, %94 : vector<16x128xf32>
    %96 = vector.broadcast %5 : vector<1x128xf32> to vector<16x128xf32>
    %97 = arith.mulf %95, %96 : vector<16x128xf32>
    %98 = vector.broadcast %6 : vector<1x128xf32> to vector<16x128xf32>
    %99 = arith.addf %97, %98 : vector<16x128xf32>
    %c0_46 = arith.constant 0 : index
    %c0_47 = arith.constant 0 : index
    %100 = vector.load %arg7[%c0_46, %c0_47] : memref<16x128xf32, #tpu.memory_space<vmem>>, vector<16x128xf32>
    tpu.vector_store %arg7[%c0_46, %c0_47], %99 {strides = array<i32>} : memref<16x128xf32, #tpu.memory_space<vmem>>, vector<16x128xf32>,
    return
  }
}

</mosaic_0001>

<llo_original>
// kernel: tpu_custom_call.1
$region0: #{tpu_custom_call.1}
  #allocation0 [shape = 'u32[]', space=smem, size = 0x4, offset = 0x4, fixed_abs, tag = 'smem constant byte address 0x4 - core index']
  #allocation1 [shape = 'u32[144,128]{1,0:T(1,128)}', space=vmem, size = 0x12000, scoped, tag = 'internal scratch']
  %s0 = inlined_call_operand.hbm [shape: bf16[16,16], index: 0, kind: input, shape index: {}]
  %s1 = inlined_call_operand.hbm [shape: bf16[16,16], index: 1, kind: input, shape index: {}]
  %s2 = inlined_call_operand.hbm [shape: bf16[16,128], index: 2, kind: input, shape index: {}]
  %s3 = inlined_call_operand.hbm [shape: bf16[256,128], index: 3, kind: input, shape index: {}]
  %s4 = inlined_call_operand.hbm [shape: bf16[256,128], index: 4, kind: input, shape index: {}]
  %s5 = inlined_call_operand.hbm [shape: bf16[128,256], index: 5, kind: input, shape index: {}]
  %s6 = inlined_call_operand.vmem [shape: f32[8,128], index: 6, kind: input, shape index: {}]
  %s7 = inlined_call_operand.hbm [shape: f32[16,128], index: 7, kind: output, shape index: {}]
  %s8 = sld [smem:[#allocation0]]
  $region62: #{tpu_custom_call.1} parent=0
    _
  %s10 = ssub.s32 1, %s8
  %s11 = scalar_select 0, %s10, %s8
  $region1: #{tpu_custom_call.1} parent=0
    #allocation2 [shape = 'u8[4096]{0}', space=vmem, size = 0x1000, scoped, tag = 'input window, operand 0, single buffered']
    #allocation3 [shape = 's32[1]{0}', space=sflag, size = 0x4, scoped, tag = 'scoped memory for tpu_custom_call.1']
    #allocation4 [shape = 's32[1]{0}', space=sflag, size = 0x4, scoped, tag = 'scoped memory for tpu_custom_call.1']
    #allocation5 [shape = 'u8[4096]{0}', space=vmem, size = 0x1000, scoped, tag = 'input window, operand 1, single buffered']
    #allocation6 [shape = 's32[1]{0}', space=sflag, size = 0x4, scoped, tag = 'scoped memory for tpu_custom_call.1']
    #allocation7 [shape = 'u8[4096]{0}', space=vmem, size = 0x1000, scoped, tag = 'input window, operand 2, single buffered']
    #allocation8 [shape = 'u8[65536]{0}', space=vmem, size = 0x10000, scoped, tag = 'input window, operand 3, single buffered']
    #allocation9 [shape = 's32[1]{0}', space=sflag, size = 0x4, scoped, tag = 'scoped memory for tpu_custom_call.1']
    #allocation10 [shape = 'u8[65536]{0}', space=vmem, size = 0x10000, scoped, tag = 'input window, operand 4, single buffered']
    #allocation11 [shape = 'u8[65536]{0}', space=vmem, size = 0x10000, scoped, tag = 'input window, operand 5, single buffered']
    #allocation12 [shape = 's32[1]{0}', space=sflag, size = 0x4, scoped, tag = 'scoped memory for tpu_custom_call.1']
    #allocation13 [shape = 'u8[8192]{0}', space=vmem, size = 0x2000, scoped, tag = 'output window, operand 0, single buffered']
    %12 = vsyncpa [#allocation3], 0
    %13 = vsyncpa [#allocation6], 0
    %14 = vsyncpa [#allocation9], 0
    %15 = vsyncpa [#allocation12], 0
    %16 = vsyncpa [#allocation4], 0
    // Predicated region
    $region2: #{tpu_custom_call.1} parent=1 // pred_check
      _
    $region3: #{tpu_custom_call.1} parent=1 // pred_check_branch
      %18 = sbr.rel (0) target = $region5
    $region4: #{tpu_custom_call.1} parent=1 // pred_region
      %s20 = ssub.s32 128, 128
      %21 = vsyncadd [#allocation3], %s20
      %s22 = sshll.u32 [#allocation2], 4
      %s23 = int_to_ptr.vmem [resolvable:$true] %s22
      %28 = dma.hbm_to_vmem [thread:$0]  %s0, 128, %s23, [#allocation3], 64, 64, 4
    $region5: #{tpu_custom_call.1} parent=1 // pred_fallthru
      _
    // Predicated region
    $region6: #{tpu_custom_call.1} parent=1 // pred_check
      _
    $region7: #{tpu_custom_call.1} parent=1 // pred_check_branch
      %30 = sbr.rel (0) target = $region9
    $region8: #{tpu_custom_call.1} parent=1 // pred_region
      %s32 = ssub.s32 128, 128
      %33 = vsyncadd [#allocation6], %s32
      %s34 = sshll.u32 [#allocation5], 4
      %s35 = int_to_ptr.vmem [resolvable:$true] %s34
      %40 = dma.hbm_to_vmem [thread:$0]  %s1, 128, %s35, [#allocation6], 64, 64, 4
    $region9: #{tpu_custom_call.1} parent=1 // pred_fallthru
      _
    // Predicated region
    $region10: #{tpu_custom_call.1} parent=1 // pred_check
      _
    $region11: #{tpu_custom_call.1} parent=1 // pred_check_branch
      %42 = sbr.rel (0) target = $region13
    $region12: #{tpu_custom_call.1} parent=1 // pred_region
      %s44 = ssub.s32 128, 128
      %45 = vsyncadd [#allocation6], %s44
      %s46 = sshll.u32 [#allocation7], 4
      %s47 = int_to_ptr.vmem [resolvable:$true] %s46
      %52 = dma.hbm_to_vmem [thread:$0]  %s2, 128, %s47, [#allocation6], 64, 64, 4
    $region13: #{tpu_custom_call.1} parent=1 // pred_fallthru
      _
    // Predicated region
    $region14: #{tpu_custom_call.1} parent=1 // pred_check
      _
    $region15: #{tpu_custom_call.1} parent=1 // pred_check_branch
      %54 = sbr.rel (0) target = $region17
    $region16: #{tpu_custom_call.1} parent=1 // pred_region
      %s56 = ssub.s32 2048, 2048
      %57 = vsyncadd [#allocation9], %s56
      %s58 = sshll.u32 [#allocation8], 4
      %s59 = int_to_ptr.vmem [resolvable:$true] %s58
      %64 = dma.hbm_to_vmem [thread:$0]  %s3, 2048, %s59, [#allocation9], 64, 64, 4
    $region17: #{tpu_custom_call.1} parent=1 // pred_fallthru
      _
    // Predicated region
    $region18: #{tpu_custom_call.1} parent=1 // pred_check
      _
    $region19: #{tpu_custom_call.1} parent=1 // pred_check_branch
      %66 = sbr.rel (0) target = $region21
    $region20: #{tpu_custom_call.1} parent=1 // pred_region
      %s68 = ssub.s32 2048, 2048
      %69 = vsyncadd [#allocation9], %s68
      %s70 = sshll.u32 [#allocation10], 4
      %s71 = int_to_ptr.vmem [resolvable:$true] %s70
      %76 = dma.hbm_to_vmem [thread:$0]  %s4, 2048, %s71, [#allocation9], 64, 64, 4
    $region21: #{tpu_custom_call.1} parent=1 // pred_fallthru
      _
    // Predicated region
    $region22: #{tpu_custom_call.1} parent=1 // pred_check
      _
    $region23: #{tpu_custom_call.1} parent=1 // pred_check_branch
      %78 = sbr.rel (0) target = $region25
    $region24: #{tpu_custom_call.1} parent=1 // pred_region
      %s80 = ssub.s32 2048, 2048
      %81 = vsyncadd [#allocation12], %s80
      %s82 = sshll.u32 [#allocation11], 4
      %s83 = int_to_ptr.vmem [resolvable:$true] %s82
      %88 = dma.hbm_to_vmem [thread:$0]  %s5, 2048, %s83, [#allocation12], 128, 128, 8
    $region25: #{tpu_custom_call.1} parent=1 // pred_fallthru
      _
    // Predicated region
    $region26: #{tpu_custom_call.1} parent=1 // pred_check
      _
    $region27: #{tpu_custom_call.1} parent=1 // pred_check_branch
      %90 = sbr.rel (0) target = $region29
    $region28: #{tpu_custom_call.1} parent=1 // pred_region
      _
    $region29: #{tpu_custom_call.1} parent=1 // pred_fallthru
      _
    // Predicated region
    $region30: #{tpu_custom_call.1} parent=1 // pred_check
      _
    $region31: #{tpu_custom_call.1} parent=1 // pred_check_branch
      %92 = sbr.rel (0) target = $region33
    $region32: #{tpu_custom_call.1} parent=1 // pred_region
      %93 = dma.done [#allocation3], 128
    $region33: #{tpu_custom_call.1} parent=1 // pred_fallthru
      _
    // Predicated region
    $region34: #{tpu_custom_call.1} parent=1 // pred_check
      _
    $region35: #{tpu_custom_call.1} parent=1 // pred_check_branch
      %95 = sbr.rel (0) target = $region37
    $region36: #{tpu_custom_call.1} parent=1 // pred_region
      %96 = dma.done [#allocation6], 128
    $region37: #{tpu_custom_call.1} parent=1 // pred_fallthru
      _
    // Predicated region
    $region38: #{tpu_custom_call.1} parent=1 // pred_check
      _
    $region39: #{tpu_custom_call.1} parent=1 // pred_check_branch
      %98 = sbr.rel (0) target = $region41
    $region40: #{tpu_custom_call.1} parent=1 // pred_region
      %99 = dma.done [#allocation6], 128
    $region41: #{tpu_custom_call.1} parent=1 // pred_fallthru
      _
    // Predicated region
    $region42: #{tpu_custom_call.1} parent=1 // pred_check
      _
    $region43: #{tpu_custom_call.1} parent=1 // pred_check_branch
      %101 = sbr.rel (0) target = $region45
    $region44: #{tpu_custom_call.1} parent=1 // pred_region
      %102 = dma.done [#allocation9], 2048
    $region45: #{tpu_custom_call.1} parent=1 // pred_fallthru
      _
    // Predicated region
    $region46: #{tpu_custom_call.1} parent=1 // pred_check
      _
    $region47: #{tpu_custom_call.1} parent=1 // pred_check_branch
      %104 = sbr.rel (0) target = $region49
    $region48: #{tpu_custom_call.1} parent=1 // pred_region
      %105 = dma.done [#allocation9], 2048
    $region49: #{tpu_custom_call.1} parent=1 // pred_fallthru
      _
    // Predicated region
    $region50: #{tpu_custom_call.1} parent=1 // pred_check
      _
    $region51: #{tpu_custom_call.1} parent=1 // pred_check_branch
      %107 = sbr.rel (0) target = $region53
    $region52: #{tpu_custom_call.1} parent=1 // pred_region
      %108 = dma.done [#allocation12], 2048
    $region53: #{tpu_custom_call.1} parent=1 // pred_fallthru
      _
    %v110 = vld [vmem:[#allocation2] sm:$0xf]
    %v111 = vld [vmem:[#allocation2 + $0x4] sm:$0xf]
    %v112 = vld [vmem:[#allocation7] sm:$0xf]
    %v113 = vld [vmem:[#allocation7 + $0x4] sm:$0xf]
    %v114 = vld [vmem:[%s6] sm:$0x1]
    %v115 = vld [vmem:[%s6 + $0x1] sm:$0x1]
    %v116 = vld [vmem:[%s6 + $0x2] sm:$0x1]
    %v117 = vld [vmem:[%s6 + $0x3] sm:$0x1]
    %v118 = vld [vmem:[%s6 + $0x4] sm:$0x1]
    %v119 = vunpack.c.l.bf16 %v110
    %v120 = vunpack.c.l.bf16 %v111
    %vm121 = vcmask 130048
    %v122 = vsel %vm121, %v119, 0.0
    %123 = vadd.xlane.f32.xlu0 %v122
    %v124 = vpop.xlane.xlu0 %123
    %v125 = vsel %vm121, %v120, 0.0
    %126 = vadd.xlane.f32.xlu0 %v125
    %v127 = vpop.xlane.xlu0 %126
    %vm128 = vcmp.gt.f32.partialorder %v124, 0.0
    %vm129 = vcmp.gt.f32.partialorder %v127, 0.0
    %v130 = vmax.f32 %v124, 1.0
    %v131 = vmax.f32 %v127, 1.0
    %v132 = vrcp.pop %v130
    %v133 = vmul.f32 1.0, %v132
    %v134 = vrcp.pop %v131
    %v135 = vmul.f32 1.0, %v134
    %v136 = vsel %vm128, %v133, 0.0
    %v137 = vsel %vm129, %v135, 0.0
    %v140 = vunpack.c.l.b16 %v110
    %v141 = vunpack.c.l.b16 %v111
    %v142 = vpack.c.b16 %v141, %v140
    %v145 = vunpack.c.l.b16 %v112
    %v146 = vunpack.c.l.b16 %v113
    %v147 = vpack.c.b16 %v146, %v145
    %v150 = vsel %vm121, %v142, 0
    %152 = vmatprep.subr.bf16.mxu0 0
    %153 = vmatpush1.bf16.msra.mxu0 0
    %154 = vmatprep.subr.bf16.mxu0 0
    %155 = vmatpush1.bf16.msra.mxu0 0
    %156 = vmatprep.subr.bf16.mxu0 0
    %157 = vmatpush1.bf16.msra.mxu0 0
    %158 = vmatprep.subr.bf16.mxu0 0
    %159 = vmatpush1.bf16.msra.mxu0 0
    %160 = vmatprep.subr.bf16.mxu0 0
    %161 = vmatpush1.bf16.msra.mxu0 0
    %162 = vmatprep.subr.bf16.mxu0 0
    %163 = vmatpush1.bf16.msra.mxu0 0
    %164 = vmatprep.subr.bf16.mxu0 0
    %165 = vmatpush1.bf16.msra.mxu0 0
    %166 = vmatprep.subr.bf16.mxu0 0
    %167 = vmatpush1.bf16.msra.mxu0 %v147
    %168 = vmatprep.subr.bf16.mxu0 0
    %169 = vmatpush2.bf16.msra.mxu0 0
    %170 = vmatprep.subr.bf16.mxu0 0
    %171 = vmatpush2.bf16.msra.mxu0 0
    %172 = vmatprep.subr.bf16.mxu0 0
    %173 = vmatpush2.bf16.msra.mxu0 0
    %174 = vmatprep.subr.bf16.mxu0 0
    %175 = vmatpush2.bf16.msra.mxu0 0
    %176 = vmatprep.subr.bf16.mxu0 0
    %177 = vmatpush2.bf16.msra.mxu0 0
    %178 = vmatprep.subr.bf16.mxu0 0
    %179 = vmatpush2.bf16.msra.mxu0 0
    %180 = vmatprep.subr.bf16.mxu0 0
    %181 = vmatpush2.bf16.msra.mxu0 0
    %182 = vmatprep.subr.bf16.mxu0 0
    %183 = vmatpush2.bf16.msra.mxu0 0
    %184 = vmatprep.mubr.bf16.mxu0 0
    %185 = vmatmul.mubr.bf16.gmra.mxu0 %v150
    %v186 = vpop.f32.mrf.mxu0
    %v187 = vadd.f32 0.0, %v186
    %v188 = vpop.f32.mrf.mxu0
    %v189 = vpop.f32.mrf.mxu0
    %v190 = vadd.f32 0.0, %v189
    %v191 = vpop.f32.mrf.mxu0
    %192 = vdwg.mxu0
    %v193 = vmul.f32 %v136, %v187
    %v194 = vmul.f32 %v137, %v190
    %v195 = vpack.c.bf16 %v194, %v193
    %v196 = vld [vmem:[#allocation8] sm:$0xf]
    %v197 = vld [vmem:[#allocation8 + $0x4] sm:$0xf]
    %v198 = vld [vmem:[#allocation8 + $0x8] sm:$0xf]
    %v199 = vld [vmem:[#allocation8 + $0xc] sm:$0xf]
    %v200 = vld [vmem:[#allocation8 + $0x10] sm:$0xf]
    %v201 = vld [vmem:[#allocation8 + $0x14] sm:$0xf]
    %v202 = vld [vmem:[#allocation8 + $0x18] sm:$0xf]
    %v203 = vld [vmem:[#allocation8 + $0x1c] sm:$0xf]
    %v204 = vld [vmem:[#allocation8 + $0x20] sm:$0xf]
    %v205 = vld [vmem:[#allocation8 + $0x24] sm:$0xf]
    %v206 = vld [vmem:[#allocation8 + $0x28] sm:$0xf]
    %v207 = vld [vmem:[#allocation8 + $0x2c] sm:$0xf]
    %v208 = vld [vmem:[#allocation8 + $0x30] sm:$0xf]
    %v209 = vld [vmem:[#allocation8 + $0x34] sm:$0xf]
    %v210 = vld [vmem:[#allocation8 + $0x38] sm:$0xf]
    %v211 = vld [vmem:[#allocation8 + $0x3c] sm:$0xf]
    %v212 = vld [vmem:[#allocation8 + $0x40] sm:$0xf]
    %v213 = vld [vmem:[#allocation8 + $0x44] sm:$0xf]
    %v214 = vld [vmem:[#allocation8 + $0x48] sm:$0xf]
    %v215 = vld [vmem:[#allocation8 + $0x4c] sm:$0xf]
    %v216 = vld [vmem:[#allocation8 + $0x50] sm:$0xf]
    %v217 = vld [vmem:[#allocation8 + $0x54] sm:$0xf]
    %v218 = vld [vmem:[#allocation8 + $0x58] sm:$0xf]
    %v219 = vld [vmem:[#allocation8 + $0x5c] sm:$0xf]
    %v220 = vld [vmem:[#allocation8 + $0x60] sm:$0xf]
    %v221 = vld [vmem:[#allocation8 + $0x64] sm:$0xf]
    %v222 = vld [vmem:[#allocation8 + $0x68] sm:$0xf]
    %v223 = vld [vmem:[#allocation8 + $0x6c] sm:$0xf]
    %v224 = vld [vmem:[#allocation8 + $0x70] sm:$0xf]
    %v225 = vld [vmem:[#allocation8 + $0x74] sm:$0xf]
    %v226 = vld [vmem:[#allocation8 + $0x78] sm:$0xf]
    %v227 = vld [vmem:[#allocation8 + $0x7c] sm:$0xf]
    %v244 = vunpack.c.l.b16 %v212
    %v245 = vunpack.c.l.b16 %v213
    %v246 = vunpack.c.l.b16 %v214
    %v247 = vunpack.c.l.b16 %v215
    %v248 = vunpack.c.l.b16 %v216
    %v249 = vunpack.c.l.b16 %v217
    %v250 = vunpack.c.l.b16 %v218
    %v251 = vunpack.c.l.b16 %v219
    %v252 = vunpack.c.l.b16 %v220
    %v253 = vunpack.c.l.b16 %v221
    %v254 = vunpack.c.l.b16 %v222
    %v255 = vunpack.c.l.b16 %v223
    %v256 = vunpack.c.l.b16 %v224
    %v257 = vunpack.c.l.b16 %v225
    %v258 = vunpack.c.l.b16 %v226
    %v259 = vunpack.c.l.b16 %v227
    %v260 = vpack.c.b16 %v245, %v244
    %v261 = vpack.c.b16 %v247, %v246
    %v262 = vpack.c.b16 %v249, %v248
    %v263 = vpack.c.b16 %v251, %v250
    %v264 = vpack.c.b16 %v253, %v252
    %v265 = vpack.c.b16 %v255, %v254
    %v266 = vpack.c.b16 %v257, %v256
    %v267 = vpack.c.b16 %v259, %v258
    %276 = vmatprep.subr.bf16.mxu0 0
    %277 = vmatpush1.bf16.msra.mxu0 %v267
    %278 = vmatprep.subr.bf16.mxu0 0
    %279 = vmatpush1.bf16.msra.mxu0 %v266
    %280 = vmatprep.subr.bf16.mxu0 0
    %281 = vmatpush1.bf16.msra.mxu0 %v265
    %282 = vmatprep.subr.bf16.mxu0 0
    %283 = vmatpush1.bf16.msra.mxu0 %v264
    %284 = vmatprep.subr.bf16.mxu0 0
    %285 = vmatpush1.bf16.msra.mxu0 %v263
    %286 = vmatprep.subr.bf16.mxu0 0
    %287 = vmatpush1.bf16.msra.mxu0 %v262
    %288 = vmatprep.subr.bf16.mxu0 0
    %289 = vmatpush1.bf16.msra.mxu0 %v261
    %290 = vmatprep.subr.bf16.mxu0 0
    %291 = vmatpush1.bf16.msra.mxu0 %v260
    %292 = vmatprep.subr.bf16.mxu0 0
    %293 = vmatpush2.bf16.msra.mxu0 0
    %294 = vmatprep.subr.bf16.mxu0 0
    %295 = vmatpush2.bf16.msra.mxu0 0
    %296 = vmatprep.subr.bf16.mxu0 0
    %297 = vmatpush2.bf16.msra.mxu0 0
    %298 = vmatprep.subr.bf16.mxu0 0
    %299 = vmatpush2.bf16.msra.mxu0 0
    %300 = vmatprep.subr.bf16.mxu0 0
    %301 = vmatpush2.bf16.msra.mxu0 0
    %302 = vmatprep.subr.bf16.mxu0 0
    %303 = vmatpush2.bf16.msra.mxu0 0
    %304 = vmatprep.subr.bf16.mxu0 0
    %305 = vmatpush2.bf16.msra.mxu0 0
    %306 = vmatprep.subr.bf16.mxu0 0
    %307 = vmatpush2.bf16.msra.mxu0 0
    %308 = vmatprep.mubr.bf16.mxu0 0
    %309 = vmatmul.mubr.bf16.gmra.mxu0 %v147
    %v310 = vpop.f32.mrf.mxu0
    %v311 = vadd.f32 0.0, %v310
    %v312 = vpop.f32.mrf.mxu0
    %v313 = vpop.f32.mrf.mxu0
    %v314 = vadd.f32 0.0, %v313
    %v315 = vpop.f32.mrf.mxu0
    %316 = vdwg.mxu0
    %v333 = vunpack.c.l.b16 %v196
    %v334 = vunpack.c.l.b16 %v197
    %v335 = vunpack.c.l.b16 %v198
    %v336 = vunpack.c.l.b16 %v199
    %v337 = vunpack.c.l.b16 %v200
    %v338 = vunpack.c.l.b16 %v201
    %v339 = vunpack.c.l.b16 %v202
    %v340 = vunpack.c.l.b16 %v203
    %v341 = vunpack.c.l.b16 %v204
    %v342 = vunpack.c.l.b16 %v205
    %v343 = vunpack.c.l.b16 %v206
    %v344 = vunpack.c.l.b16 %v207
    %v345 = vunpack.c.l.b16 %v208
    %v346 = vunpack.c.l.b16 %v209
    %v347 = vunpack.c.l.b16 %v210
    %v348 = vunpack.c.l.b16 %v211
    %v349 = vpack.c.b16 %v334, %v333
    %v350 = vpack.c.b16 %v336, %v335
    %v351 = vpack.c.b16 %v338, %v337
    %v352 = vpack.c.b16 %v340, %v339
    %v353 = vpack.c.b16 %v342, %v341
    %v354 = vpack.c.b16 %v344, %v343
    %v355 = vpack.c.b16 %v346, %v345
    %v356 = vpack.c.b16 %v348, %v347
    %365 = vmatprep.subr.bf16.mxu0 0
    %366 = vmatpush1.bf16.msra.mxu0 %v356
    %367 = vmatprep.subr.bf16.mxu0 0
    %368 = vmatpush1.bf16.msra.mxu0 %v355
    %369 = vmatprep.subr.bf16.mxu0 0
    %370 = vmatpush1.bf16.msra.mxu0 %v354
    %371 = vmatprep.subr.bf16.mxu0 0
    %372 = vmatpush1.bf16.msra.mxu0 %v353
    %373 = vmatprep.subr.bf16.mxu0 0
    %374 = vmatpush1.bf16.msra.mxu0 %v352
    %375 = vmatprep.subr.bf16.mxu0 0
    %376 = vmatpush1.bf16.msra.mxu0 %v351
    %377 = vmatprep.subr.bf16.mxu0 0
    %378 = vmatpush1.bf16.msra.mxu0 %v350
    %379 = vmatprep.subr.bf16.mxu0 0
    %380 = vmatpush1.bf16.msra.mxu0 %v349
    %381 = vmatprep.subr.bf16.mxu0 0
    %382 = vmatpush2.bf16.msra.mxu0 0
    %383 = vmatprep.subr.bf16.mxu0 0
    %384 = vmatpush2.bf16.msra.mxu0 0
    %385 = vmatprep.subr.bf16.mxu0 0
    %386 = vmatpush2.bf16.msra.mxu0 0
    %387 = vmatprep.subr.bf16.mxu0 0
    %388 = vmatpush2.bf16.msra.mxu0 0
    %389 = vmatprep.subr.bf16.mxu0 0
    %390 = vmatpush2.bf16.msra.mxu0 0
    %391 = vmatprep.subr.bf16.mxu0 0
    %392 = vmatpush2.bf16.msra.mxu0 0
    %393 = vmatprep.subr.bf16.mxu0 0
    %394 = vmatpush2.bf16.msra.mxu0 0
    %395 = vmatprep.subr.bf16.mxu0 0
    %396 = vmatpush2.bf16.msra.mxu0 0
    %397 = vmatprep.mubr.bf16.mxu0 0
    %398 = vmatmul.mubr.bf16.gmra.mxu0 %v195
    %v399 = vpop.f32.mrf.mxu0
    %v400 = vadd.f32 %v311, %v399
    %v401 = vpop.f32.mrf.mxu0
    %v402 = vpop.f32.mrf.mxu0
    %v403 = vadd.f32 %v314, %v402
    %v404 = vpop.f32.mrf.mxu0
    %405 = vdwg.mxu0
    %v406 = vlaneseq
    %v407 = vshrl.u32 %v406, 7
    %v408 = vsub.s32 0, %v407
    %v409 = vrot.slane %v114, %v408
    %v410 = vadd.f32 %v400, %v409
    %v411 = vadd.f32 %v403, %v409
    %v412 = vmax.f32 %v410, 0.0
    %v413 = vmax.f32 %v411, 0.0
    %v414 = vpack.c.bf16 %v413, %v412
    %415 = vmatprep.subr.bf16.mxu0 0
    %416 = vmatpush1.bf16.msra.mxu0 0
    %417 = vmatprep.subr.bf16.mxu0 0
    %418 = vmatpush1.bf16.msra.mxu0 0
    %419 = vmatprep.subr.bf16.mxu0 0
    %420 = vmatpush1.bf16.msra.mxu0 0
    %421 = vmatprep.subr.bf16.mxu0 0
    %422 = vmatpush1.bf16.msra.mxu0 0
    %423 = vmatprep.subr.bf16.mxu0 0
    %424 = vmatpush1.bf16.msra.mxu0 0
    %425 = vmatprep.subr.bf16.mxu0 0
    %426 = vmatpush1.bf16.msra.mxu0 0
    %427 = vmatprep.subr.bf16.mxu0 0
    %428 = vmatpush1.bf16.msra.mxu0 0
    %429 = vmatprep.subr.bf16.mxu0 0
    %430 = vmatpush1.bf16.msra.mxu0 %v414
    %431 = vmatprep.subr.bf16.mxu0 0
    %432 = vmatpush2.bf16.msra.mxu0 0
    %433 = vmatprep.subr.bf16.mxu0 0
    %434 = vmatpush2.bf16.msra.mxu0 0
    %435 = vmatprep.subr.bf16.mxu0 0
    %436 = vmatpush2.bf16.msra.mxu0 0
    %437 = vmatprep.subr.bf16.mxu0 0
    %438 = vmatpush2.bf16.msra.mxu0 0
    %439 = vmatprep.subr.bf16.mxu0 0
    %440 = vmatpush2.bf16.msra.mxu0 0
    %441 = vmatprep.subr.bf16.mxu0 0
    %442 = vmatpush2.bf16.msra.mxu0 0
    %443 = vmatprep.subr.bf16.mxu0 0
    %444 = vmatpush2.bf16.msra.mxu0 0
    %445 = vmatprep.subr.bf16.mxu0 0
    %446 = vmatpush2.bf16.msra.mxu0 0
    %447 = vmatprep.mubr.bf16.mxu0 0
    %448 = vmatmul.mubr.bf16.gmra.mxu0 %v150
    %v449 = vpop.f32.mrf.mxu0
    %v450 = vadd.f32 0.0, %v449
    %v451 = vpop.f32.mrf.mxu0
    %v452 = vpop.f32.mrf.mxu0
    %v453 = vadd.f32 0.0, %v452
    %v454 = vpop.f32.mrf.mxu0
    %455 = vdwg.mxu0
    %v456 = vmul.f32 %v136, %v450
    %v457 = vmul.f32 %v137, %v453
    %v458 = vpack.c.bf16 %v457, %v456
    %v459 = vld [vmem:[#allocation10] sm:$0xf]
    %v460 = vld [vmem:[#allocation10 + $0x4] sm:$0xf]
    %v461 = vld [vmem:[#allocation10 + $0x8] sm:$0xf]
    %v462 = vld [vmem:[#allocation10 + $0xc] sm:$0xf]
    %v463 = vld [vmem:[#allocation10 + $0x10] sm:$0xf]
    %v464 = vld [vmem:[#allocation10 + $0x14] sm:$0xf]
    %v465 = vld [vmem:[#allocation10 + $0x18] sm:$0xf]
    %v466 = vld [vmem:[#allocation10 + $0x1c] sm:$0xf]
    %v467 = vld [vmem:[#allocation10 + $0x20] sm:$0xf]
    %v468 = vld [vmem:[#allocation10 + $0x24] sm:$0xf]
    %v469 = vld [vmem:[#allocation10 + $0x28] sm:$0xf]
    %v470 = vld [vmem:[#allocation10 + $0x2c] sm:$0xf]
    %v471 = vld [vmem:[#allocation10 + $0x30] sm:$0xf]
    %v472 = vld [vmem:[#allocation10 + $0x34] sm:$0xf]
    %v473 = vld [vmem:[#allocation10 + $0x38] sm:$0xf]
    %v474 = vld [vmem:[#allocation10 + $0x3c] sm:$0xf]
    %v475 = vld [vmem:[#allocation10 + $0x40] sm:$0xf]
    %v476 = vld [vmem:[#allocation10 + $0x44] sm:$0xf]
    %v477 = vld [vmem:[#allocation10 + $0x48] sm:$0xf]
    %v478 = vld [vmem:[#allocation10 + $0x4c] sm:$0xf]
    %v479 = vld [vmem:[#allocation10 + $0x50] sm:$0xf]
    %v480 = vld [vmem:[#allocation10 + $0x54] sm:$0xf]
    %v481 = vld [vmem:[#allocation10 + $0x58] sm:$0xf]
    %v482 = vld [vmem:[#allocation10 + $0x5c] sm:$0xf]
    %v483 = vld [vmem:[#allocation10 + $0x60] sm:$0xf]
    %v484 = vld [vmem:[#allocation10 + $0x64] sm:$0xf]
    %v485 = vld [vmem:[#allocation10 + $0x68] sm:$0xf]
    %v486 = vld [vmem:[#allocation10 + $0x6c] sm:$0xf]
    %v487 = vld [vmem:[#allocation10 + $0x70] sm:$0xf]
    %v488 = vld [vmem:[#allocation10 + $0x74] sm:$0xf]
    %v489 = vld [vmem:[#allocation10 + $0x78] sm:$0xf]
    %v490 = vld [vmem:[#allocation10 + $0x7c] sm:$0xf]
    %v507 = vunpack.c.l.b16 %v475
    %v508 = vunpack.c.l.b16 %v476
    %v509 = vunpack.c.l.b16 %v477
    %v510 = vunpack.c.l.b16 %v478
    %v511 = vunpack.c.l.b16 %v479
    %v512 = vunpack.c.l.b16 %v480
    %v513 = vunpack.c.l.b16 %v481
    %v514 = vunpack.c.l.b16 %v482
    %v515 = vunpack.c.l.b16 %v483
    %v516 = vunpack.c.l.b16 %v484
    %v517 = vunpack.c.l.b16 %v485
    %v518 = vunpack.c.l.b16 %v486
    %v519 = vunpack.c.l.b16 %v487
    %v520 = vunpack.c.l.b16 %v488
    %v521 = vunpack.c.l.b16 %v489
    %v522 = vunpack.c.l.b16 %v490
    %v523 = vpack.c.b16 %v508, %v507
    %v524 = vpack.c.b16 %v510, %v509
    %v525 = vpack.c.b16 %v512, %v511
    %v526 = vpack.c.b16 %v514, %v513
    %v527 = vpack.c.b16 %v516, %v515
    %v528 = vpack.c.b16 %v518, %v517
    %v529 = vpack.c.b16 %v520, %v519
    %v530 = vpack.c.b16 %v522, %v521
    %539 = vmatprep.subr.bf16.mxu0 0
    %540 = vmatpush1.bf16.msra.mxu0 %v530
    %541 = vmatprep.subr.bf16.mxu0 0
    %542 = vmatpush1.bf16.msra.mxu0 %v529
    %543 = vmatprep.subr.bf16.mxu0 0
    %544 = vmatpush1.bf16.msra.mxu0 %v528
    %545 = vmatprep.subr.bf16.mxu0 0
    %546 = vmatpush1.bf16.msra.mxu0 %v527
    %547 = vmatprep.subr.bf16.mxu0 0
    %548 = vmatpush1.bf16.msra.mxu0 %v526
    %549 = vmatprep.subr.bf16.mxu0 0
    %550 = vmatpush1.bf16.msra.mxu0 %v525
    %551 = vmatprep.subr.bf16.mxu0 0
    %552 = vmatpush1.bf16.msra.mxu0 %v524
    %553 = vmatprep.subr.bf16.mxu0 0
    %554 = vmatpush1.bf16.msra.mxu0 %v523
    %555 = vmatprep.subr.bf16.mxu0 0
    %556 = vmatpush2.bf16.msra.mxu0 0
    %557 = vmatprep.subr.bf16.mxu0 0
    %558 = vmatpush2.bf16.msra.mxu0 0
    %559 = vmatprep.subr.bf16.mxu0 0
    %560 = vmatpush2.bf16.msra.mxu0 0
    %561 = vmatprep.subr.bf16.mxu0 0
    %562 = vmatpush2.bf16.msra.mxu0 0
    %563 = vmatprep.subr.bf16.mxu0 0
    %564 = vmatpush2.bf16.msra.mxu0 0
    %565 = vmatprep.subr.bf16.mxu0 0
    %566 = vmatpush2.bf16.msra.mxu0 0
    %567 = vmatprep.subr.bf16.mxu0 0
    %568 = vmatpush2.bf16.msra.mxu0 0
    %569 = vmatprep.subr.bf16.mxu0 0
    %570 = vmatpush2.bf16.msra.mxu0 0
    %571 = vmatprep.mubr.bf16.mxu0 0
    %572 = vmatmul.mubr.bf16.gmra.mxu0 %v414
    %v573 = vpop.f32.mrf.mxu0
    %v574 = vadd.f32 0.0, %v573
    %v575 = vpop.f32.mrf.mxu0
    %v576 = vpop.f32.mrf.mxu0
    %v577 = vadd.f32 0.0, %v576
    %v578 = vpop.f32.mrf.mxu0
    %579 = vdwg.mxu0
    %v596 = vunpack.c.l.b16 %v459
    %v597 = vunpack.c.l.b16 %v460
    %v598 = vunpack.c.l.b16 %v461
    %v599 = vunpack.c.l.b16 %v462
    %v600 = vunpack.c.l.b16 %v463
    %v601 = vunpack.c.l.b16 %v464
    %v602 = vunpack.c.l.b16 %v465
    %v603 = vunpack.c.l.b16 %v466
    %v604 = vunpack.c.l.b16 %v467
    %v605 = vunpack.c.l.b16 %v468
    %v606 = vunpack.c.l.b16 %v469
    %v607 = vunpack.c.l.b16 %v470
    %v608 = vunpack.c.l.b16 %v471
    %v609 = vunpack.c.l.b16 %v472
    %v610 = vunpack.c.l.b16 %v473
    %v611 = vunpack.c.l.b16 %v474
    %v612 = vpack.c.b16 %v597, %v596
    %v613 = vpack.c.b16 %v599, %v598
    %v614 = vpack.c.b16 %v601, %v600
    %v615 = vpack.c.b16 %v603, %v602
    %v616 = vpack.c.b16 %v605, %v604
    %v617 = vpack.c.b16 %v607, %v606
    %v618 = vpack.c.b16 %v609, %v608
    %v619 = vpack.c.b16 %v611, %v610
    %628 = vmatprep.subr.bf16.mxu0 0
    %629 = vmatpush1.bf16.msra.mxu0 %v619
    %630 = vmatprep.subr.bf16.mxu0 0
    %631 = vmatpush1.bf16.msra.mxu0 %v618
    %632 = vmatprep.subr.bf16.mxu0 0
    %633 = vmatpush1.bf16.msra.mxu0 %v617
    %634 = vmatprep.subr.bf16.mxu0 0
    %635 = vmatpush1.bf16.msra.mxu0 %v616
    %636 = vmatprep.subr.bf16.mxu0 0
    %637 = vmatpush1.bf16.msra.mxu0 %v615
    %638 = vmatprep.subr.bf16.mxu0 0
    %639 = vmatpush1.bf16.msra.mxu0 %v614
    %640 = vmatprep.subr.bf16.mxu0 0
    %641 = vmatpush1.bf16.msra.mxu0 %v613
    %642 = vmatprep.subr.bf16.mxu0 0
    %643 = vmatpush1.bf16.msra.mxu0 %v612
    %644 = vmatprep.subr.bf16.mxu0 0
    %645 = vmatpush2.bf16.msra.mxu0 0
    %646 = vmatprep.subr.bf16.mxu0 0
    %647 = vmatpush2.bf16.msra.mxu0 0
    %648 = vmatprep.subr.bf16.mxu0 0
    %649 = vmatpush2.bf16.msra.mxu0 0
    %650 = vmatprep.subr.bf16.mxu0 0
    %651 = vmatpush2.bf16.msra.mxu0 0
    %652 = vmatprep.subr.bf16.mxu0 0
    %653 = vmatpush2.bf16.msra.mxu0 0
    %654 = vmatprep.subr.bf16.mxu0 0
    %655 = vmatpush2.bf16.msra.mxu0 0
    %656 = vmatprep.subr.bf16.mxu0 0
    %657 = vmatpush2.bf16.msra.mxu0 0
    %658 = vmatprep.subr.bf16.mxu0 0
    %659 = vmatpush2.bf16.msra.mxu0 0
    %660 = vmatprep.mubr.bf16.mxu0 0
    %661 = vmatmul.mubr.bf16.gmra.mxu0 %v458
    %v662 = vpop.f32.mrf.mxu0
    %v663 = vadd.f32 %v574, %v662
    %v664 = vpop.f32.mrf.mxu0
    %v665 = vpop.f32.mrf.mxu0
    %v666 = vadd.f32 %v577, %v665
    %v667 = vpop.f32.mrf.mxu0
    %668 = vdwg.mxu0
    %v669 = vlaneseq
    %v670 = vshrl.u32 %v669, 7
    %v671 = vsub.s32 0, %v670
    %v672 = vrot.slane %v115, %v671
    %v673 = vadd.f32 %v663, %v672
    %v674 = vadd.f32 %v666, %v672
    %v675 = vmax.f32 %v673, 0.0
    %v676 = vmax.f32 %v674, 0.0
    %v677 = vpack.c.bf16 %v676, %v675
    %v678 = vld [vmem:[#allocation11] sm:$0xff]
    %v679 = vld [vmem:[#allocation11 + $0x8] sm:$0xff]
    %v680 = vld [vmem:[#allocation11 + $0x10] sm:$0xff]
    %v681 = vld [vmem:[#allocation11 + $0x18] sm:$0xff]
    %v682 = vld [vmem:[#allocation11 + $0x20] sm:$0xff]
    %v683 = vld [vmem:[#allocation11 + $0x28] sm:$0xff]
    %v684 = vld [vmem:[#allocation11 + $0x30] sm:$0xff]
    %v685 = vld [vmem:[#allocation11 + $0x38] sm:$0xff]
    %v686 = vld [vmem:[#allocation11 + $0x40] sm:$0xff]
    %v687 = vld [vmem:[#allocation11 + $0x48] sm:$0xff]
    %v688 = vld [vmem:[#allocation11 + $0x50] sm:$0xff]
    %v689 = vld [vmem:[#allocation11 + $0x58] sm:$0xff]
    %v690 = vld [vmem:[#allocation11 + $0x60] sm:$0xff]
    %v691 = vld [vmem:[#allocation11 + $0x68] sm:$0xff]
    %v692 = vld [vmem:[#allocation11 + $0x70] sm:$0xff]
    %v693 = vld [vmem:[#allocation11 + $0x78] sm:$0xff]
    %v710 = vunpack.c.l.b16 %v678
    %v711 = vunpack.c.h.b16 %v678
    %v712 = vunpack.c.l.b16 %v679
    %v713 = vunpack.c.h.b16 %v679
    %v714 = vunpack.c.l.b16 %v680
    %v715 = vunpack.c.h.b16 %v680
    %v716 = vunpack.c.l.b16 %v681
    %v717 = vunpack.c.h.b16 %v681
    %v718 = vunpack.c.l.b16 %v682
    %v719 = vunpack.c.h.b16 %v682
    %v720 = vunpack.c.l.b16 %v683
    %v721 = vunpack.c.h.b16 %v683
    %v722 = vunpack.c.l.b16 %v684
    %v723 = vunpack.c.h.b16 %v684
    %v724 = vunpack.c.l.b16 %v685
    %v725 = vunpack.c.h.b16 %v685
    %v726 = vunpack.c.l.b16 %v686
    %v727 = vunpack.c.h.b16 %v686
    %v728 = vunpack.c.l.b16 %v687
    %v729 = vunpack.c.h.b16 %v687
    %v730 = vunpack.c.l.b16 %v688
    %v731 = vunpack.c.h.b16 %v688
    %v732 = vunpack.c.l.b16 %v689
    %v733 = vunpack.c.h.b16 %v689
    %v734 = vunpack.c.l.b16 %v690
    %v735 = vunpack.c.h.b16 %v690
    %v736 = vunpack.c.l.b16 %v691
    %v737 = vunpack.c.h.b16 %v691
    %v738 = vunpack.c.l.b16 %v692
    %v739 = vunpack.c.h.b16 %v692
    %v740 = vunpack.c.l.b16 %v693
    %v741 = vunpack.c.h.b16 %v693
    %v742 = vpack.c.b16 %v712, %v710
    %v743 = vpack.c.b16 %v713, %v711
    %v744 = vpack.c.b16 %v716, %v714
    %v745 = vpack.c.b16 %v717, %v715
    %v746 = vpack.c.b16 %v720, %v718
    %v747 = vpack.c.b16 %v721, %v719
    %v748 = vpack.c.b16 %v724, %v722
    %v749 = vpack.c.b16 %v725, %v723
    %v750 = vpack.c.b16 %v728, %v726
    %v751 = vpack.c.b16 %v729, %v727
    %v752 = vpack.c.b16 %v732, %v730
    %v753 = vpack.c.b16 %v733, %v731
    %v754 = vpack.c.b16 %v736, %v734
    %v755 = vpack.c.b16 %v737, %v735
    %v756 = vpack.c.b16 %v740, %v738
    %v757 = vpack.c.b16 %v741, %v739
    %774 = vmatprep.subr.bf16.mxu0 %v757
    %775 = vmatpush1.bf16.msra.mxu0 %v756
    %776 = vmatprep.subr.bf16.mxu0 %v755
    %777 = vmatpush1.bf16.msra.mxu0 %v754
    %778 = vmatprep.subr.bf16.mxu0 %v753
    %779 = vmatpush1.bf16.msra.mxu0 %v752
    %780 = vmatprep.subr.bf16.mxu0 %v751
    %781 = vmatpush1.bf16.msra.mxu0 %v750
    %782 = vmatprep.subr.bf16.mxu0 %v749
    %783 = vmatpush1.bf16.msra.mxu0 %v748
    %784 = vmatprep.subr.bf16.mxu0 %v747
    %785 = vmatpush1.bf16.msra.mxu0 %v746
    %786 = vmatprep.subr.bf16.mxu0 %v745
    %787 = vmatpush1.bf16.msra.mxu0 %v744
    %788 = vmatprep.subr.bf16.mxu0 %v743
    %789 = vmatpush1.bf16.msra.mxu0 %v742
    %790 = vmatprep.subr.bf16.mxu0 0
    %791 = vmatpush2.bf16.msra.mxu0 0
    %792 = vmatprep.subr.bf16.mxu0 0
    %793 = vmatpush2.bf16.msra.mxu0 0
    %794 = vmatprep.subr.bf16.mxu0 0
    %795 = vmatpush2.bf16.msra.mxu0 0
    %796 = vmatprep.subr.bf16.mxu0 0
    %797 = vmatpush2.bf16.msra.mxu0 0
    %798 = vmatprep.subr.bf16.mxu0 0
    %799 = vmatpush2.bf16.msra.mxu0 0
    %800 = vmatprep.subr.bf16.mxu0 0
    %801 = vmatpush2.bf16.msra.mxu0 0
    %802 = vmatprep.subr.bf16.mxu0 0
    %803 = vmatpush2.bf16.msra.mxu0 0
    %804 = vmatprep.subr.bf16.mxu0 0
    %805 = vmatpush2.bf16.msra.mxu0 0
    %806 = vmatprep.mubr.bf16.mxu0 0
    %807 = vmatmul.mubr.bf16.gmra.mxu0 %v677
    %v808 = vpop.f32.mrf.mxu0
    %v809 = vadd.f32 0.0, %v808
    %v810 = vpop.f32.mrf.mxu0
    %v811 = vadd.f32 0.0, %v810
    %v812 = vpop.f32.mrf.mxu0
    %v813 = vadd.f32 0.0, %v812
    %v814 = vpop.f32.mrf.mxu0
    %v815 = vadd.f32 0.0, %v814
    %816 = vdwg.mxu0
    %v817 = vpack.c.bf16 %v813, %v809
    %818 = vmatprep.subr.bf16.mxu0 0
    %819 = vmatpush1.bf16.msra.mxu0 0
    %820 = vmatprep.subr.bf16.mxu0 0
    %821 = vmatpush1.bf16.msra.mxu0 0
    %822 = vmatprep.subr.bf16.mxu0 0
    %823 = vmatpush1.bf16.msra.mxu0 0
    %824 = vmatprep.subr.bf16.mxu0 0
    %825 = vmatpush1.bf16.msra.mxu0 0
    %826 = vmatprep.subr.bf16.mxu0 0
    %827 = vmatpush1.bf16.msra.mxu0 0
    %828 = vmatprep.subr.bf16.mxu0 0
    %829 = vmatpush1.bf16.msra.mxu0 0
    %830 = vmatprep.subr.bf16.mxu0 0
    %831 = vmatpush1.bf16.msra.mxu0 0
    %832 = vmatprep.subr.bf16.mxu0 0
    %833 = vmatpush1.bf16.msra.mxu0 %v817
    %834 = vmatprep.subr.bf16.mxu0 0
    %835 = vmatpush2.bf16.msra.mxu0 0
    %836 = vmatprep.subr.bf16.mxu0 0
    %837 = vmatpush2.bf16.msra.mxu0 0
    %838 = vmatprep.subr.bf16.mxu0 0
    %839 = vmatpush2.bf16.msra.mxu0 0
    %840 = vmatprep.subr.bf16.mxu0 0
    %841 = vmatpush2.bf16.msra.mxu0 0
    %842 = vmatprep.subr.bf16.mxu0 0
    %843 = vmatpush2.bf16.msra.mxu0 0
    %844 = vmatprep.subr.bf16.mxu0 0
    %845 = vmatpush2.bf16.msra.mxu0 0
    %846 = vmatprep.subr.bf16.mxu0 0
    %847 = vmatpush2.bf16.msra.mxu0 0
    %848 = vmatprep.subr.bf16.mxu0 0
    %849 = vmatpush2.bf16.msra.mxu0 0
    %850 = vmatprep.mubr.bf16.mxu0 0
    %851 = vmatmul.mubr.bf16.gmra.mxu0 %v150
    %v852 = vpop.f32.mrf.mxu0
    %v853 = vadd.f32 0.0, %v852
    %v854 = vpop.f32.mrf.mxu0
    %v855 = vpop.f32.mrf.mxu0
    %v856 = vadd.f32 0.0, %v855
    %v857 = vpop.f32.mrf.mxu0
    %858 = vdwg.mxu0
    %v859 = vmul.f32 %v136, %v853
    %v860 = vmul.f32 %v137, %v856
    %v861 = vadd.f32 %v859, %v811
    %v862 = vadd.f32 %v860, %v815
    %v863 = vlaneseq
    %v864 = vshrl.u32 %v863, 7
    %v865 = vsub.s32 0, %v864
    %v866 = vrot.slane %v116, %v865
    %v867 = vadd.f32 %v861, %v866
    %v868 = vadd.f32 %v862, %v866
    %v869 = vld [vmem:[#allocation5] sm:$0xf]
    %v870 = vld [vmem:[#allocation5 + $0x4] sm:$0xf]
    %v871 = vunpack.c.l.bf16 %v869
    %v872 = vunpack.c.l.bf16 %v870
    %v873 = vsel %vm121, %v871, 0.0
    %874 = vadd.xlane.f32.xlu0 %v873
    %v875 = vpop.xlane.xlu0 %874
    %v876 = vsel %vm121, %v872, 0.0
    %877 = vadd.xlane.f32.xlu0 %v876
    %v878 = vpop.xlane.xlu0 %877
    %vm879 = vcmp.gt.f32.partialorder %v875, 0.0
    %vm880 = vcmp.gt.f32.partialorder %v878, 0.0
    %v881 = vmax.f32 %v875, 1.0
    %v882 = vmax.f32 %v878, 1.0
    %v883 = vrcp.pop %v881
    %v884 = vmul.f32 1.0, %v883
    %v885 = vrcp.pop %v882
    %v886 = vmul.f32 1.0, %v885
    %v887 = vsel %vm879, %v884, 0.0
    %v888 = vsel %vm880, %v886, 0.0
    %v889 = vpack.c.bf16 %v868, %v867
    %v892 = vunpack.c.l.b16 %v869
    %v893 = vunpack.c.l.b16 %v870
    %v894 = vpack.c.b16 %v893, %v892
    %v896 = vsel %vm121, %v894, 0
    %898 = vmatprep.subr.bf16.mxu0 0
    %899 = vmatpush1.bf16.msra.mxu0 0
    %900 = vmatprep.subr.bf16.mxu0 0
    %901 = vmatpush1.bf16.msra.mxu0 0
    %902 = vmatprep.subr.bf16.mxu0 0
    %903 = vmatpush1.bf16.msra.mxu0 0
    %904 = vmatprep.subr.bf16.mxu0 0
    %905 = vmatpush1.bf16.msra.mxu0 0
    %906 = vmatprep.subr.bf16.mxu0 0
    %907 = vmatpush1.bf16.msra.mxu0 0
    %908 = vmatprep.subr.bf16.mxu0 0
    %909 = vmatpush1.bf16.msra.mxu0 0
    %910 = vmatprep.subr.bf16.mxu0 0
    %911 = vmatpush1.bf16.msra.mxu0 0
    %912 = vmatprep.subr.bf16.mxu0 0
    %913 = vmatpush1.bf16.msra.mxu0 %v889
    %914 = vmatprep.subr.bf16.mxu0 0
    %915 = vmatpush2.bf16.msra.mxu0 0
    %916 = vmatprep.subr.bf16.mxu0 0
    %917 = vmatpush2.bf16.msra.mxu0 0
    %918 = vmatprep.subr.bf16.mxu0 0
    %919 = vmatpush2.bf16.msra.mxu0 0
    %920 = vmatprep.subr.bf16.mxu0 0
    %921 = vmatpush2.bf16.msra.mxu0 0
    %922 = vmatprep.subr.bf16.mxu0 0
    %923 = vmatpush2.bf16.msra.mxu0 0
    %924 = vmatprep.subr.bf16.mxu0 0
    %925 = vmatpush2.bf16.msra.mxu0 0
    %926 = vmatprep.subr.bf16.mxu0 0
    %927 = vmatpush2.bf16.msra.mxu0 0
    %928 = vmatprep.subr.bf16.mxu0 0
    %929 = vmatpush2.bf16.msra.mxu0 0
    %930 = vmatprep.mubr.bf16.mxu0 0
    %931 = vmatmul.mubr.bf16.gmra.mxu0 %v896
    %v932 = vpop.f32.mrf.mxu0
    %v933 = vadd.f32 0.0, %v932
    %v934 = vpop.f32.mrf.mxu0
    %v935 = vpop.f32.mrf.mxu0
    %v936 = vadd.f32 0.0, %v935
    %v937 = vpop.f32.mrf.mxu0
    %938 = vdwg.mxu0
    %v939 = vmul.f32 %v887, %v933
    %v940 = vmul.f32 %v888, %v936
    %v941 = vlaneseq
    %v942 = vand.u32 %v941, 127
    %vm943 = vcmp.lt.s32.totalorder %v942, 16
    %944 = vadd.xlane.f32.xlu0 %v939
    %v945 = vpop.xlane.xlu0 %944
    %946 = vadd.xlane.f32.xlu0 %v940
    %v947 = vpop.xlane.xlu0 %946
    %v948 = vmul.f32 %v945, 0.0625
    %v949 = vmul.f32 %v947, 0.0625
    %v950 = vsub.f32 %v939, %v948
    %v951 = vsub.f32 %v940, %v949
    %v952 = vsel %vm943, 1, 0
    %vm953 = vcmp.eq.s32.totalorder %v952, 1
    %v954 = vsel %vm953, %v950, 0.0
    %v955 = vsel %vm953, %v951, 0.0
    %v956 = vmul.f32 %v954, %v954
    %v957 = vmul.f32 %v955, %v955
    %958 = vadd.xlane.f32.xlu0 %v956
    %v959 = vpop.xlane.xlu0 %958
    %960 = vadd.xlane.f32.xlu0 %v957
    %v961 = vpop.xlane.xlu0 %960
    %v962 = vmul.f32 %v959, 0.0625
    %v963 = vmul.f32 %v961, 0.0625
    %v964 = vadd.f32 %v962, 1e-05
    %v965 = vadd.f32 %v963, 1e-05
    %v966 = vrsqrt.pop %v964
    %v967 = vrsqrt.pop %v965
    %v968 = vmul.f32 %v954, %v966
    %v969 = vmul.f32 %v955, %v967
    %v970 = vlaneseq
    %v971 = vshrl.u32 %v970, 7
    %v972 = vsub.s32 0, %v971
    %v973 = vrot.slane %v117, %v972
    %v974 = vmul.f32 %v968, %v973
    %v975 = vmul.f32 %v969, %v973
    %v976 = vlaneseq
    %v977 = vshrl.u32 %v976, 7
    %v978 = vsub.s32 0, %v977
    %v979 = vrot.slane %v118, %v978
    %v980 = vadd.f32 %v974, %v979
    %v981 = vadd.f32 %v975, %v979
    %982 = vst [vmem:[#allocation13] sm:$0xff] %v980
    %983 = vst [vmem:[#allocation13 + $0x8] sm:$0xff] %v981
    // Predicated region
    $region54: #{tpu_custom_call.1} parent=1 // pred_check
      _
    $region55: #{tpu_custom_call.1} parent=1 // pred_check_branch
      %985 = sbr.rel (0) target = $region57
    $region56: #{tpu_custom_call.1} parent=1 // pred_region
      %s987 = ssub.s32 256, 256
      %988 = vsyncadd [#allocation4], %s987
      %s989 = sshll.u32 [#allocation13], 4
      %s990 = int_to_ptr.vmem [resolvable:$true] %s989
      %995 = dma.vmem_to_hbm [thread:$0]  %s990, 256, %s7, [#allocation4], 128, 128, 8
    $region57: #{tpu_custom_call.1} parent=1 // pred_fallthru
      _
    // Predicated region
    $region58: #{tpu_custom_call.1} parent=1 // pred_check
      _
    $region59: #{tpu_custom_call.1} parent=1 // pred_check_branch
      %997 = sbr.rel (0) target = $region61
    $region60: #{tpu_custom_call.1} parent=1 // pred_region
      %998 = dma.done [#allocation4], 256
    $region61: #{tpu_custom_call.1} parent=1 // pred_fallthru
      _
    %999 = vsyncpa [#allocation3], 1
    %1000 = vsyncpa [#allocation6], 1
    %1001 = vsyncpa [#allocation9], 1
    %1002 = vsyncpa [#allocation12], 1
    %1003 = vsyncpa [#allocation4], 1

</llo_original>
